<compile_context>
chip_gen: v7x
topology: tpu7x:2x2x1
jax: 0.10.0
libtpu: 0.0.40
codegen_flags: <defaults>
</compile_context>

<pallas_src>
import functools

import jax
import jax.numpy as jnp
from jax.experimental import pallas as pl
from jax.experimental.pallas import tpu as pltpu

N_LAYERS = 5          # 4 hidden Linear+ReLU, 1 output Linear per branch
LANE = 128            # TPU lane width; everything is padded to 128 lanes
BIAS_LANE = LANE - 1  # lane carrying the constant 1.0 that activates the bias row


# ---------------------------------------------------------------------------
# Kernel
# ---------------------------------------------------------------------------
def _dueling_kernel(x_ref, w_ref, out_ref, *, n_actions, inv_count):
    """Fused dueling forward on VMEM-resident tiles.

    x_ref  : (Bp, 128) f32  — features in lanes [0:C), 1.0 in BIAS_LANE (real rows only)
    w_ref  : (N_LAYERS, 128, 128) f32 packed weight slab (biases folded in)
    out_ref: (Bp, 128) f32  — lanes [0:n_actions) hold the final answer
    """
    h = x_ref[...]  # (Bp, 128)

    # Fused trunk: one MXU matmul per layer serves both branches.
    for layer in range(N_LAYERS - 1):
        h = jnp.dot(h, w_ref[layer], preferred_element_type=jnp.float32)
        h = jnp.maximum(h, 0.0)  # ReLU; bias-lane passthrough (value 1.0) survives

    out = jnp.dot(h, w_ref[N_LAYERS - 1], preferred_element_type=jnp.float32)
    # out lanes: [0:n)  = value + advantage   (combined on the MXU)
    #            [n:2n) = advantage alone     (only needed for the scalar mean)

    lane = jax.lax.broadcasted_iota(jnp.int32, out.shape, 1)
    adv_mask = (lane >= n_actions) & (lane < 2 * n_actions)
    adv_sum = jnp.sum(jnp.where(adv_mask, out, 0.0))      # XLU reduce
    adv_mean = adv_sum * inv_count                         # compile-time 1/(B*n)

    # Full-width (lane-dense) store; wrapper slices to n_actions.
    out_ref[...] = (out - adv_mean).astype(out_ref.dtype)


# ---------------------------------------------------------------------------
# Parameter packing (done once, outside the hot path)
# ---------------------------------------------------------------------------
def pack_params(value_ws, value_bs, adv_ws, adv_bs, in_channels, hidden_dim, n_actions):
    """Pack both branches (weights stored as (in, out), biases as (out,)) into one
    (N_LAYERS, 128, 128) slab with biases folded into row BIAS_LANE."""
    H, n = hidden_dim, n_actions
    assert max(in_channels, 2 * H, 2 * n) <= BIAS_LANE, "dims too large for 128-lane packing"

    slab = jnp.zeros((N_LAYERS, LANE, LANE), jnp.float32)

    # Layer 0: concatenate branches along the output axis.
    slab = slab.at[0, :in_channels, 0:H].set(value_ws[0])
    slab = slab.at[0, :in_channels, H:2 * H].set(adv_ws[0])
    slab = slab.at[0, BIAS_LANE, 0:H].set(value_bs[0])
    slab = slab.at[0, BIAS_LANE, H:2 * H].set(adv_bs[0])
    slab = slab.at[0, BIAS_LANE, BIAS_LANE].set(1.0)   # keep bias lane alive

    # Layers 1-3: block-diagonal fusion.
    for l in range(1, N_LAYERS - 1):
        slab = slab.at[l, 0:H, 0:H].set(value_ws[l])
        slab = slab.at[l, H:2 * H, H:2 * H].set(adv_ws[l])
        slab = slab.at[l, BIAS_LANE, 0:H].set(value_bs[l])
        slab = slab.at[l, BIAS_LANE, H:2 * H].set(adv_bs[l])
        slab = slab.at[l, BIAS_LANE, BIAS_LANE].set(1.0)

    # Head: columns [0:n) = value + advantage (combined by the MXU),
    #       columns [n:2n) = advantage alone (for the scalar mean).
    L = N_LAYERS - 1
    slab = slab.at[L, 0:H, 0:n].set(value_ws[L])
    slab = slab.at[L, H:2 * H, 0:n].set(adv_ws[L])
    slab = slab.at[L, H:2 * H, n:2 * n].set(adv_ws[L])
    slab = slab.at[L, BIAS_LANE, 0:n].set(value_bs[L] + adv_bs[L])
    slab = slab.at[L, BIAS_LANE, n:2 * n].set(adv_bs[L])
    return slab


# ---------------------------------------------------------------------------
# Forward wrapper
# ---------------------------------------------------------------------------
@functools.partial(jax.jit, static_argnames=("n_actions",))
def hiv_dueling_forward(x, w_slab, *, n_actions):
    B, C = x.shape
    Bp = max(8, ((B + 7) // 8) * 8)   # sublane-aligned batch

    # Pad x to a lane-dense (Bp, 128) tile; set the bias lane on real rows only,
    # so padded rows stay exactly zero and never pollute the advantage mean.
    xp = jnp.zeros((Bp, LANE), jnp.float32)
    xp = xp.at[:B, :C].set(x.astype(jnp.float32))
    xp = xp.at[:B, BIAS_LANE].set(1.0)

    inv_count = 1.0 / float(B * n_actions)   # baked as a compile-time constant
    kernel = functools.partial(_dueling_kernel, n_actions=n_actions, inv_count=inv_count)

    vmem = pl.BlockSpec(memory_space=pltpu.MemorySpace.VMEM)
    out = pl.pallas_call(
        kernel,
        out_shape=jax.ShapeDtypeStruct((Bp, LANE), jnp.float32),
        in_specs=[vmem, vmem],
        out_specs=vmem,
    )(xp, w_slab)
    return out[:B, :n_actions]


# ---------------------------------------------------------------------------
# Init + pure-JAX reference
# ---------------------------------------------------------------------------
def init_branch_params(key, in_channels, hidden_dim, n_actions):
    """torch.nn.Linear-style init: U(-1/sqrt(fan_in), 1/sqrt(fan_in)).
    Weights stored as (in, out); biases as (out,)."""
    dims = [in_channels] + [hidden_dim] * 4 + [n_actions]
    ws, bs = [], []
    for i in range(N_LAYERS):
        fan_in, fan_out = dims[i], dims[i + 1]
        key, kw, kb = jax.random.split(key, 3)
        bound = 1.0 / jnp.sqrt(jnp.float32(fan_in))
        ws.append(jax.random.uniform(kw, (fan_in, fan_out), jnp.float32, -bound, bound))
        bs.append(jax.random.uniform(kb, (fan_out,), jnp.float32, -bound, bound))
    return ws, bs, key


def reference_forward(x, value_ws, value_bs, adv_ws, adv_bs):
    def branch(h, ws, bs):
        for i in range(N_LAYERS - 1):
            h = jnp.maximum(h @ ws[i] + bs[i], 0.0)
        return h @ ws[N_LAYERS - 1] + bs[N_LAYERS - 1]

    v = branch(x, value_ws, value_bs)
    a = branch(x, adv_ws, adv_bs)
    return v + a - jnp.mean(a)


if __name__ == "__main__":
    in_channels = 6      # HIV environment state dim
    hidden_dim = 32
    n_actions = 4
    batch = 8

    key = jax.random.PRNGKey(0)
    value_ws, value_bs, key = init_branch_params(key, in_channels, hidden_dim, n_actions)
    adv_ws, adv_bs, key = init_branch_params(key, in_channels, hidden_dim, n_actions)
    key, kx = jax.random.split(key)
    x = jax.random.normal(kx, (batch, in_channels), jnp.float32)

    # One-time packing of all 20 parameter tensors into a single weight slab.
    w_slab = pack_params(value_ws, value_bs, adv_ws, adv_bs,
                         in_channels, hidden_dim, n_actions)
    w_slab = jax.block_until_ready(w_slab)

    out = hiv_dueling_forward(x, w_slab, n_actions=n_actions)
    out = jax.block_until_ready(out)

    ref = reference_forward(x, value_ws, value_bs, adv_ws, adv_bs)
    assert out.shape == (batch, n_actions)
    assert jnp.allclose(out, ref, atol=1e-5, rtol=1e-5), "mismatch vs JAX reference"

    print("KERNEL_OK")
</pallas_src>

<mosaic_0001>
module attributes {stable_mosaic.version = 11 : i64} {
  func.func @_dueling_kernel(%arg0: memref<8x128xf32, #tpu.memory_space<vmem>>, %arg1: memref<5x128x128xf32, #tpu.memory_space<vmem>>, %arg2: memref<8x128xf32, #tpu.memory_space<vmem>>) attributes {dimension_semantics = [], scalar_prefetch = 0 : i64, scratch_operands = 0 : i64, tpu.core_type = #tpu.core_type<tc>} {
    %c0 = arith.constant 0 : index
    %c0_0 = arith.constant 0 : index
    %0 = vector.load %arg0[%c0, %c0_0] : memref<8x128xf32, #tpu.memory_space<vmem>>, vector<8x128xf32>
    %c0_1 = arith.constant 0 : index
    %c0_2 = arith.constant 0 : index
    %c0_3 = arith.constant 0 : index
    %1 = vector.load %arg1[%c0_1, %c0_2, %c0_3] : memref<5x128x128xf32, #tpu.memory_space<vmem>>, vector<1x128x128xf32>
    %2 = vector.shape_cast %1 : vector<1x128x128xf32> to vector<128x128xf32>
    %cst = arith.constant dense<0.000000e+00> : vector<8x128xf32>
    %3 = tpu.matmul %0, %2, %cst {dimension_numbers = #tpu.dot_dimension_numbers<[1], [0], [0], [1], [0, 0, 1, 1], [], []>} : vector<8x128xf32>, vector<128x128xf32>, vector<8x128xf32> -> vector<8x128xf32>
    %cst_4 = arith.constant 0.000000e+00 : f32
    %4 = vector.broadcast %cst_4 : f32 to vector<8x128xf32>
    %5 = arith.maximumf %3, %4 : vector<8x128xf32>
    %c1 = arith.constant 1 : index
    %c0_5 = arith.constant 0 : index
    %c0_6 = arith.constant 0 : index
    %6 = vector.load %arg1[%c1, %c0_5, %c0_6] : memref<5x128x128xf32, #tpu.memory_space<vmem>>, vector<1x128x128xf32>
    %7 = vector.shape_cast %6 : vector<1x128x128xf32> to vector<128x128xf32>
    %cst_7 = arith.constant dense<0.000000e+00> : vector<8x128xf32>
    %8 = tpu.matmul %5, %7, %cst_7 {dimension_numbers = #tpu.dot_dimension_numbers<[1], [0], [0], [1], [0, 0, 1, 1], [], []>} : vector<8x128xf32>, vector<128x128xf32>, vector<8x128xf32> -> vector<8x128xf32>
    %cst_8 = arith.constant 0.000000e+00 : f32
    %9 = vector.broadcast %cst_8 : f32 to vector<8x128xf32>
    %10 = arith.maximumf %8, %9 : vector<8x128xf32>
    %c2 = arith.constant 2 : index
    %c0_9 = arith.constant 0 : index
    %c0_10 = arith.constant 0 : index
    %11 = vector.load %arg1[%c2, %c0_9, %c0_10] : memref<5x128x128xf32, #tpu.memory_space<vmem>>, vector<1x128x128xf32>
    %12 = vector.shape_cast %11 : vector<1x128x128xf32> to vector<128x128xf32>
    %cst_11 = arith.constant dense<0.000000e+00> : vector<8x128xf32>
    %13 = tpu.matmul %10, %12, %cst_11 {dimension_numbers = #tpu.dot_dimension_numbers<[1], [0], [0], [1], [0, 0, 1, 1], [], []>} : vector<8x128xf32>, vector<128x128xf32>, vector<8x128xf32> -> vector<8x128xf32>
    %cst_12 = arith.constant 0.000000e+00 : f32
    %14 = vector.broadcast %cst_12 : f32 to vector<8x128xf32>
    %15 = arith.maximumf %13, %14 : vector<8x128xf32>
    %c3 = arith.constant 3 : index
    %c0_13 = arith.constant 0 : index
    %c0_14 = arith.constant 0 : index
    %16 = vector.load %arg1[%c3, %c0_13, %c0_14] : memref<5x128x128xf32, #tpu.memory_space<vmem>>, vector<1x128x128xf32>
    %17 = vector.shape_cast %16 : vector<1x128x128xf32> to vector<128x128xf32>
    %cst_15 = arith.constant dense<0.000000e+00> : vector<8x128xf32>
    %18 = tpu.matmul %15, %17, %cst_15 {dimension_numbers = #tpu.dot_dimension_numbers<[1], [0], [0], [1], [0, 0, 1, 1], [], []>} : vector<8x128xf32>, vector<128x128xf32>, vector<8x128xf32> -> vector<8x128xf32>
    %cst_16 = arith.constant 0.000000e+00 : f32
    %19 = vector.broadcast %cst_16 : f32 to vector<8x128xf32>
    %20 = arith.maximumf %18, %19 : vector<8x128xf32>
    %c4 = arith.constant 4 : index
    %c0_17 = arith.constant 0 : index
    %c0_18 = arith.constant 0 : index
    %21 = vector.load %arg1[%c4, %c0_17, %c0_18] : memref<5x128x128xf32, #tpu.memory_space<vmem>>, vector<1x128x128xf32>
    %22 = vector.shape_cast %21 : vector<1x128x128xf32> to vector<128x128xf32>
    %cst_19 = arith.constant dense<0.000000e+00> : vector<8x128xf32>
    %23 = tpu.matmul %20, %22, %cst_19 {dimension_numbers = #tpu.dot_dimension_numbers<[1], [0], [0], [1], [0, 0, 1, 1], [], []>} : vector<8x128xf32>, vector<128x128xf32>, vector<8x128xf32> -> vector<8x128xf32>
    %24 = tpu.iota {dimensions = array<i32: 1>} : vector<8x128xi32>
    %c4_i32 = arith.constant 4 : i32
    %25 = vector.broadcast %c4_i32 : i32 to vector<8x128xi32>
    %26 = arith.cmpi sge, %24, %25 : vector<8x128xi32>
    %c8_i32 = arith.constant 8 : i32
    %27 = vector.broadcast %c8_i32 : i32 to vector<8x128xi32>
    %28 = arith.cmpi slt, %24, %27 : vector<8x128xi32>
    %29 = arith.andi %26, %28 : vector<8x128xi1>
    %cst_20 = arith.constant 0.000000e+00 : f32
    %30 = vector.broadcast %cst_20 : f32 to vector<8x128xf32>
    %31 = arith.select %29, %23, %30 : vector<8x128xi1>, vector<8x128xf32>
    %32 = vector.shape_cast %31 : vector<8x128xf32> to vector<1x8x128xf32>
    %cst_21 = arith.constant dense<0.000000e+00> : vector<1xf32>
    %33 = vector.multi_reduction <add>, %32, %cst_21 [1, 2] : vector<1x8x128xf32> to vector<1xf32>
    %34 = vector.shape_cast %33 : vector<1xf32> to vector<1x1x1xf32>
    %35 = vector.extract %34[0, 0, 0] : f32 from vector<1x1x1xf32>
    %cst_22 = arith.constant 3.125000e-02 : f32
    %36 = arith.mulf %35, %cst_22 : f32
    %37 = vector.broadcast %36 : f32 to vector<8x128xf32>
    %38 = arith.subf %23, %37 : vector<8x128xf32>
    %c0_23 = arith.constant 0 : index
    %c0_24 = arith.constant 0 : index
    %39 = vector.load %arg2[%c0_23, %c0_24] : memref<8x128xf32, #tpu.memory_space<vmem>>, vector<8x128xf32>
    tpu.vector_store %arg2[%c0_23, %c0_24], %38 {strides = array<i32>} : memref<8x128xf32, #tpu.memory_space<vmem>>, vector<8x128xf32>,
    return
  }
}

</mosaic_0001>

<llo_original>
// kernel: hiv_dueling_forward.1
$region0: #{hiv_dueling_forward.1}
  #allocation0 [shape = 'u32[]', space=smem, size = 0x4, offset = 0x4, fixed_abs, tag = 'smem constant byte address 0x4 - core index']
  #allocation1 [shape = 'u32[144,128]{1,0:T(1,128)}', space=vmem, size = 0x12000, scoped, tag = 'internal scratch']
  %s0 = inlined_call_operand.vmem [shape: f32[8,128], index: 0, kind: input, shape index: {}]
  %s1 = inlined_call_operand.hbm [shape: f32[5,128,128], index: 1, kind: input, shape index: {}]
  %s2 = inlined_call_operand.vmem [shape: f32[8,128], index: 2, kind: output, shape index: {}]
  %s3 = sld [smem:[#allocation0]]
  $region22: #{hiv_dueling_forward.1} parent=0
    _
  %s5 = ssub.s32 1, %s3
  %s6 = scalar_select 0, %s5, %s3
  $region1: #{hiv_dueling_forward.1} parent=0
    #allocation2 [shape = 'u8[327680]{0}', space=vmem, size = 0x50000, scoped, tag = 'input window, operand 1, single buffered']
    #allocation3 [shape = 's32[1]{0}', space=sflag, size = 0x4, scoped, tag = 'scoped memory for hiv_dueling_forward.1']
    %7 = vsyncpa [#allocation3], 0
    // Predicated region
    $region2: #{hiv_dueling_forward.1} parent=1 // pred_check
      _
    $region3: #{hiv_dueling_forward.1} parent=1 // pred_check_branch
      %9 = sbr.rel (0) target = $region5
    $region4: #{hiv_dueling_forward.1} parent=1 // pred_region
      _
    $region5: #{hiv_dueling_forward.1} parent=1 // pred_fallthru
      _
    // Predicated region
    $region6: #{hiv_dueling_forward.1} parent=1 // pred_check
      _
    $region7: #{hiv_dueling_forward.1} parent=1 // pred_check_branch
      %11 = sbr.rel (0) target = $region9
    $region8: #{hiv_dueling_forward.1} parent=1 // pred_region
      %s13 = ssub.s32 10240, 10240
      %14 = vsyncadd [#allocation3], %s13
      %s15 = sshll.u32 [#allocation2], 4
      %s16 = int_to_ptr.vmem [resolvable:$true] %s15
      %21 = dma.hbm_to_vmem [thread:$0]  %s1, 10240, %s16, [#allocation3], 128, 128, 8
    $region9: #{hiv_dueling_forward.1} parent=1 // pred_fallthru
      _
    // Predicated region
    $region10: #{hiv_dueling_forward.1} parent=1 // pred_check
      _
    $region11: #{hiv_dueling_forward.1} parent=1 // pred_check_branch
      %23 = sbr.rel (0) target = $region13
    $region12: #{hiv_dueling_forward.1} parent=1 // pred_region
      %24 = dma.done [#allocation3], 10240
    $region13: #{hiv_dueling_forward.1} parent=1 // pred_fallthru
      _
    %v25 = vld [vmem:[%s0] sm:$0xff]
    %v26 = vld [vmem:[#allocation2] sm:$0xff]
    %v27 = vld [vmem:[#allocation2 + $0x8] sm:$0xff]
    %v28 = vld [vmem:[#allocation2 + $0x10] sm:$0xff]
    %v29 = vld [vmem:[#allocation2 + $0x18] sm:$0xff]
    %v30 = vld [vmem:[#allocation2 + $0x20] sm:$0xff]
    %v31 = vld [vmem:[#allocation2 + $0x28] sm:$0xff]
    %v32 = vld [vmem:[#allocation2 + $0x30] sm:$0xff]
    %v33 = vld [vmem:[#allocation2 + $0x38] sm:$0xff]
    %v34 = vld [vmem:[#allocation2 + $0x40] sm:$0xff]
    %v35 = vld [vmem:[#allocation2 + $0x48] sm:$0xff]
    %v36 = vld [vmem:[#allocation2 + $0x50] sm:$0xff]
    %v37 = vld [vmem:[#allocation2 + $0x58] sm:$0xff]
    %v38 = vld [vmem:[#allocation2 + $0x60] sm:$0xff]
    %v39 = vld [vmem:[#allocation2 + $0x68] sm:$0xff]
    %v40 = vld [vmem:[#allocation2 + $0x70] sm:$0xff]
    %v41 = vld [vmem:[#allocation2 + $0x78] sm:$0xff]
    %42 = vmatprep.subr.mxu0 0.0
    %43 = vmatpush1.msra.mxu0 %v26
    %44 = vmatprep.subr.mxu0 0.0
    %45 = vmatpush1.msra.mxu0 %v27
    %46 = vmatprep.subr.mxu0 0.0
    %47 = vmatpush1.msra.mxu0 %v28
    %48 = vmatprep.subr.mxu0 0.0
    %49 = vmatpush1.msra.mxu0 %v29
    %50 = vmatprep.subr.mxu0 0.0
    %51 = vmatpush1.msra.mxu0 %v30
    %52 = vmatprep.subr.mxu0 0.0
    %53 = vmatpush1.msra.mxu0 %v31
    %54 = vmatprep.subr.mxu0 0.0
    %55 = vmatpush1.msra.mxu0 %v32
    %56 = vmatprep.subr.mxu0 0.0
    %57 = vmatpush1.msra.mxu0 %v33
    %58 = vmatprep.subr.mxu0 0.0
    %59 = vmatpush1.msra.mxu0 %v34
    %60 = vmatprep.subr.mxu0 0.0
    %61 = vmatpush1.msra.mxu0 %v35
    %62 = vmatprep.subr.mxu0 0.0
    %63 = vmatpush1.msra.mxu0 %v36
    %64 = vmatprep.subr.mxu0 0.0
    %65 = vmatpush1.msra.mxu0 %v37
    %66 = vmatprep.subr.mxu0 0.0
    %67 = vmatpush1.msra.mxu0 %v38
    %68 = vmatprep.subr.mxu0 0.0
    %69 = vmatpush1.msra.mxu0 %v39
    %70 = vmatprep.subr.mxu0 0.0
    %71 = vmatpush1.msra.mxu0 %v40
    %72 = vmatprep.subr.mxu0 0.0
    %73 = vmatpush1.msra.mxu0 %v41
    %74 = vmatprep.subr.mxu0 0.0
    %75 = vmatpush1.msra.mxu0 0.0
    %76 = vmatprep.subr.mxu0 0.0
    %77 = vmatpush1.msra.mxu0 0.0
    %78 = vmatprep.subr.mxu0 0.0
    %79 = vmatpush1.msra.mxu0 0.0
    %80 = vmatprep.subr.mxu0 0.0
    %81 = vmatpush1.msra.mxu0 0.0
    %82 = vmatprep.subr.mxu0 0.0
    %83 = vmatpush1.msra.mxu0 0.0
    %84 = vmatprep.subr.mxu0 0.0
    %85 = vmatpush1.msra.mxu0 0.0
    %86 = vmatprep.subr.mxu0 0.0
    %87 = vmatpush1.msra.mxu0 0.0
    %88 = vmatprep.subr.mxu0 0.0
    %89 = vmatpush1.msra.mxu0 0.0
    %90 = vmatprep.subr.mxu0 0.0
    %91 = vmatpush1.msra.mxu0 0.0
    %92 = vmatprep.subr.mxu0 0.0
    %93 = vmatpush1.msra.mxu0 0.0
    %94 = vmatprep.subr.mxu0 0.0
    %95 = vmatpush1.msra.mxu0 0.0
    %96 = vmatprep.subr.mxu0 0.0
    %97 = vmatpush1.msra.mxu0 0.0
    %98 = vmatprep.subr.mxu0 0.0
    %99 = vmatpush1.msra.mxu0 0.0
    %100 = vmatprep.subr.mxu0 0.0
    %101 = vmatpush1.msra.mxu0 0.0
    %102 = vmatprep.subr.mxu0 0.0
    %103 = vmatpush1.msra.mxu0 0.0
    %104 = vmatprep.subr.mxu0 0.0
    %105 = vmatpush1.msra.mxu0 0.0
    %106 = vmatprep.mubr.f32.mxu0 0.0
    %107 = vmatmul.mubr.f32.gmra.mrb[0].mxu0 %v25
    %v108 = vpop.f32.mrb[0].mxu0
    %v109 = vadd.f32 0.0, %v108
    %v110 = vpop.f32.mrb[0].mxu0
    %111 = vdwg.mxu0
    %v112 = vmax.f32 %v109, 0.0
    %s113 = scalar_lea.vmem [#allocation2], 128
    %v114 = vld [vmem:[%s113] sm:$0xff]
    %v115 = vld [vmem:[%s113 + $0x8] sm:$0xff]
    %v116 = vld [vmem:[%s113 + $0x10] sm:$0xff]
    %v117 = vld [vmem:[%s113 + $0x18] sm:$0xff]
    %v118 = vld [vmem:[%s113 + $0x20] sm:$0xff]
    %v119 = vld [vmem:[%s113 + $0x28] sm:$0xff]
    %v120 = vld [vmem:[%s113 + $0x30] sm:$0xff]
    %v121 = vld [vmem:[%s113 + $0x38] sm:$0xff]
    %v122 = vld [vmem:[%s113 + $0x40] sm:$0xff]
    %v123 = vld [vmem:[%s113 + $0x48] sm:$0xff]
    %v124 = vld [vmem:[%s113 + $0x50] sm:$0xff]
    %v125 = vld [vmem:[%s113 + $0x58] sm:$0xff]
    %v126 = vld [vmem:[%s113 + $0x60] sm:$0xff]
    %v127 = vld [vmem:[%s113 + $0x68] sm:$0xff]
    %v128 = vld [vmem:[%s113 + $0x70] sm:$0xff]
    %v129 = vld [vmem:[%s113 + $0x78] sm:$0xff]
    %130 = vmatprep.subr.mxu0 0.0
    %131 = vmatpush1.msra.mxu0 %v114
    %132 = vmatprep.subr.mxu0 0.0
    %133 = vmatpush1.msra.mxu0 %v115
    %134 = vmatprep.subr.mxu0 0.0
    %135 = vmatpush1.msra.mxu0 %v116
    %136 = vmatprep.subr.mxu0 0.0
    %137 = vmatpush1.msra.mxu0 %v117
    %138 = vmatprep.subr.mxu0 0.0
    %139 = vmatpush1.msra.mxu0 %v118
    %140 = vmatprep.subr.mxu0 0.0
    %141 = vmatpush1.msra.mxu0 %v119
    %142 = vmatprep.subr.mxu0 0.0
    %143 = vmatpush1.msra.mxu0 %v120
    %144 = vmatprep.subr.mxu0 0.0
    %145 = vmatpush1.msra.mxu0 %v121
    %146 = vmatprep.subr.mxu0 0.0
    %147 = vmatpush1.msra.mxu0 %v122
    %148 = vmatprep.subr.mxu0 0.0
    %149 = vmatpush1.msra.mxu0 %v123
    %150 = vmatprep.subr.mxu0 0.0
    %151 = vmatpush1.msra.mxu0 %v124
    %152 = vmatprep.subr.mxu0 0.0
    %153 = vmatpush1.msra.mxu0 %v125
    %154 = vmatprep.subr.mxu0 0.0
    %155 = vmatpush1.msra.mxu0 %v126
    %156 = vmatprep.subr.mxu0 0.0
    %157 = vmatpush1.msra.mxu0 %v127
    %158 = vmatprep.subr.mxu0 0.0
    %159 = vmatpush1.msra.mxu0 %v128
    %160 = vmatprep.subr.mxu0 0.0
    %161 = vmatpush1.msra.mxu0 %v129
    %162 = vmatprep.subr.mxu0 0.0
    %163 = vmatpush1.msra.mxu0 0.0
    %164 = vmatprep.subr.mxu0 0.0
    %165 = vmatpush1.msra.mxu0 0.0
    %166 = vmatprep.subr.mxu0 0.0
    %167 = vmatpush1.msra.mxu0 0.0
    %168 = vmatprep.subr.mxu0 0.0
    %169 = vmatpush1.msra.mxu0 0.0
    %170 = vmatprep.subr.mxu0 0.0
    %171 = vmatpush1.msra.mxu0 0.0
    %172 = vmatprep.subr.mxu0 0.0
    %173 = vmatpush1.msra.mxu0 0.0
    %174 = vmatprep.subr.mxu0 0.0
    %175 = vmatpush1.msra.mxu0 0.0
    %176 = vmatprep.subr.mxu0 0.0
    %177 = vmatpush1.msra.mxu0 0.0
    %178 = vmatprep.subr.mxu0 0.0
    %179 = vmatpush1.msra.mxu0 0.0
    %180 = vmatprep.subr.mxu0 0.0
    %181 = vmatpush1.msra.mxu0 0.0
    %182 = vmatprep.subr.mxu0 0.0
    %183 = vmatpush1.msra.mxu0 0.0
    %184 = vmatprep.subr.mxu0 0.0
    %185 = vmatpush1.msra.mxu0 0.0
    %186 = vmatprep.subr.mxu0 0.0
    %187 = vmatpush1.msra.mxu0 0.0
    %188 = vmatprep.subr.mxu0 0.0
    %189 = vmatpush1.msra.mxu0 0.0
    %190 = vmatprep.subr.mxu0 0.0
    %191 = vmatpush1.msra.mxu0 0.0
    %192 = vmatprep.subr.mxu0 0.0
    %193 = vmatpush1.msra.mxu0 0.0
    %194 = vmatprep.mubr.f32.mxu0 0.0
    %195 = vmatmul.mubr.f32.gmra.mrb[0].mxu0 %v112
    %v196 = vpop.f32.mrb[0].mxu0
    %v197 = vadd.f32 0.0, %v196
    %v198 = vpop.f32.mrb[0].mxu0
    %199 = vdwg.mxu0
    %v200 = vmax.f32 %v197, 0.0
    %s201 = scalar_lea.vmem [#allocation2], 256
    %v202 = vld [vmem:[%s201] sm:$0xff]
    %v203 = vld [vmem:[%s201 + $0x8] sm:$0xff]
    %v204 = vld [vmem:[%s201 + $0x10] sm:$0xff]
    %v205 = vld [vmem:[%s201 + $0x18] sm:$0xff]
    %v206 = vld [vmem:[%s201 + $0x20] sm:$0xff]
    %v207 = vld [vmem:[%s201 + $0x28] sm:$0xff]
    %v208 = vld [vmem:[%s201 + $0x30] sm:$0xff]
    %v209 = vld [vmem:[%s201 + $0x38] sm:$0xff]
    %v210 = vld [vmem:[%s201 + $0x40] sm:$0xff]
    %v211 = vld [vmem:[%s201 + $0x48] sm:$0xff]
    %v212 = vld [vmem:[%s201 + $0x50] sm:$0xff]
    %v213 = vld [vmem:[%s201 + $0x58] sm:$0xff]
    %v214 = vld [vmem:[%s201 + $0x60] sm:$0xff]
    %v215 = vld [vmem:[%s201 + $0x68] sm:$0xff]
    %v216 = vld [vmem:[%s201 + $0x70] sm:$0xff]
    %v217 = vld [vmem:[%s201 + $0x78] sm:$0xff]
    %218 = vmatprep.subr.mxu0 0.0
    %219 = vmatpush1.msra.mxu0 %v202
    %220 = vmatprep.subr.mxu0 0.0
    %221 = vmatpush1.msra.mxu0 %v203
    %222 = vmatprep.subr.mxu0 0.0
    %223 = vmatpush1.msra.mxu0 %v204
    %224 = vmatprep.subr.mxu0 0.0
    %225 = vmatpush1.msra.mxu0 %v205
    %226 = vmatprep.subr.mxu0 0.0
    %227 = vmatpush1.msra.mxu0 %v206
    %228 = vmatprep.subr.mxu0 0.0
    %229 = vmatpush1.msra.mxu0 %v207
    %230 = vmatprep.subr.mxu0 0.0
    %231 = vmatpush1.msra.mxu0 %v208
    %232 = vmatprep.subr.mxu0 0.0
    %233 = vmatpush1.msra.mxu0 %v209
    %234 = vmatprep.subr.mxu0 0.0
    %235 = vmatpush1.msra.mxu0 %v210
    %236 = vmatprep.subr.mxu0 0.0
    %237 = vmatpush1.msra.mxu0 %v211
    %238 = vmatprep.subr.mxu0 0.0
    %239 = vmatpush1.msra.mxu0 %v212
    %240 = vmatprep.subr.mxu0 0.0
    %241 = vmatpush1.msra.mxu0 %v213
    %242 = vmatprep.subr.mxu0 0.0
    %243 = vmatpush1.msra.mxu0 %v214
    %244 = vmatprep.subr.mxu0 0.0
    %245 = vmatpush1.msra.mxu0 %v215
    %246 = vmatprep.subr.mxu0 0.0
    %247 = vmatpush1.msra.mxu0 %v216
    %248 = vmatprep.subr.mxu0 0.0
    %249 = vmatpush1.msra.mxu0 %v217
    %250 = vmatprep.subr.mxu0 0.0
    %251 = vmatpush1.msra.mxu0 0.0
    %252 = vmatprep.subr.mxu0 0.0
    %253 = vmatpush1.msra.mxu0 0.0
    %254 = vmatprep.subr.mxu0 0.0
    %255 = vmatpush1.msra.mxu0 0.0
    %256 = vmatprep.subr.mxu0 0.0
    %257 = vmatpush1.msra.mxu0 0.0
    %258 = vmatprep.subr.mxu0 0.0
    %259 = vmatpush1.msra.mxu0 0.0
    %260 = vmatprep.subr.mxu0 0.0
    %261 = vmatpush1.msra.mxu0 0.0
    %262 = vmatprep.subr.mxu0 0.0
    %263 = vmatpush1.msra.mxu0 0.0
    %264 = vmatprep.subr.mxu0 0.0
    %265 = vmatpush1.msra.mxu0 0.0
    %266 = vmatprep.subr.mxu0 0.0
    %267 = vmatpush1.msra.mxu0 0.0
    %268 = vmatprep.subr.mxu0 0.0
    %269 = vmatpush1.msra.mxu0 0.0
    %270 = vmatprep.subr.mxu0 0.0
    %271 = vmatpush1.msra.mxu0 0.0
    %272 = vmatprep.subr.mxu0 0.0
    %273 = vmatpush1.msra.mxu0 0.0
    %274 = vmatprep.subr.mxu0 0.0
    %275 = vmatpush1.msra.mxu0 0.0
    %276 = vmatprep.subr.mxu0 0.0
    %277 = vmatpush1.msra.mxu0 0.0
    %278 = vmatprep.subr.mxu0 0.0
    %279 = vmatpush1.msra.mxu0 0.0
    %280 = vmatprep.subr.mxu0 0.0
    %281 = vmatpush1.msra.mxu0 0.0
    %282 = vmatprep.mubr.f32.mxu0 0.0
    %283 = vmatmul.mubr.f32.gmra.mrb[0].mxu0 %v200
    %v284 = vpop.f32.mrb[0].mxu0
    %v285 = vadd.f32 0.0, %v284
    %v286 = vpop.f32.mrb[0].mxu0
    %287 = vdwg.mxu0
    %v288 = vmax.f32 %v285, 0.0
    %s289 = scalar_lea.vmem [#allocation2], 384
    %v290 = vld [vmem:[%s289] sm:$0xff]
    %v291 = vld [vmem:[%s289 + $0x8] sm:$0xff]
    %v292 = vld [vmem:[%s289 + $0x10] sm:$0xff]
    %v293 = vld [vmem:[%s289 + $0x18] sm:$0xff]
    %v294 = vld [vmem:[%s289 + $0x20] sm:$0xff]
    %v295 = vld [vmem:[%s289 + $0x28] sm:$0xff]
    %v296 = vld [vmem:[%s289 + $0x30] sm:$0xff]
    %v297 = vld [vmem:[%s289 + $0x38] sm:$0xff]
    %v298 = vld [vmem:[%s289 + $0x40] sm:$0xff]
    %v299 = vld [vmem:[%s289 + $0x48] sm:$0xff]
    %v300 = vld [vmem:[%s289 + $0x50] sm:$0xff]
    %v301 = vld [vmem:[%s289 + $0x58] sm:$0xff]
    %v302 = vld [vmem:[%s289 + $0x60] sm:$0xff]
    %v303 = vld [vmem:[%s289 + $0x68] sm:$0xff]
    %v304 = vld [vmem:[%s289 + $0x70] sm:$0xff]
    %v305 = vld [vmem:[%s289 + $0x78] sm:$0xff]
    %306 = vmatprep.subr.mxu0 0.0
    %307 = vmatpush1.msra.mxu0 %v290
    %308 = vmatprep.subr.mxu0 0.0
    %309 = vmatpush1.msra.mxu0 %v291
    %310 = vmatprep.subr.mxu0 0.0
    %311 = vmatpush1.msra.mxu0 %v292
    %312 = vmatprep.subr.mxu0 0.0
    %313 = vmatpush1.msra.mxu0 %v293
    %314 = vmatprep.subr.mxu0 0.0
    %315 = vmatpush1.msra.mxu0 %v294
    %316 = vmatprep.subr.mxu0 0.0
    %317 = vmatpush1.msra.mxu0 %v295
    %318 = vmatprep.subr.mxu0 0.0
    %319 = vmatpush1.msra.mxu0 %v296
    %320 = vmatprep.subr.mxu0 0.0
    %321 = vmatpush1.msra.mxu0 %v297
    %322 = vmatprep.subr.mxu0 0.0
    %323 = vmatpush1.msra.mxu0 %v298
    %324 = vmatprep.subr.mxu0 0.0
    %325 = vmatpush1.msra.mxu0 %v299
    %326 = vmatprep.subr.mxu0 0.0
    %327 = vmatpush1.msra.mxu0 %v300
    %328 = vmatprep.subr.mxu0 0.0
    %329 = vmatpush1.msra.mxu0 %v301
    %330 = vmatprep.subr.mxu0 0.0
    %331 = vmatpush1.msra.mxu0 %v302
    %332 = vmatprep.subr.mxu0 0.0
    %333 = vmatpush1.msra.mxu0 %v303
    %334 = vmatprep.subr.mxu0 0.0
    %335 = vmatpush1.msra.mxu0 %v304
    %336 = vmatprep.subr.mxu0 0.0
    %337 = vmatpush1.msra.mxu0 %v305
    %338 = vmatprep.subr.mxu0 0.0
    %339 = vmatpush1.msra.mxu0 0.0
    %340 = vmatprep.subr.mxu0 0.0
    %341 = vmatpush1.msra.mxu0 0.0
    %342 = vmatprep.subr.mxu0 0.0
    %343 = vmatpush1.msra.mxu0 0.0
    %344 = vmatprep.subr.mxu0 0.0
    %345 = vmatpush1.msra.mxu0 0.0
    %346 = vmatprep.subr.mxu0 0.0
    %347 = vmatpush1.msra.mxu0 0.0
    %348 = vmatprep.subr.mxu0 0.0
    %349 = vmatpush1.msra.mxu0 0.0
    %350 = vmatprep.subr.mxu0 0.0
    %351 = vmatpush1.msra.mxu0 0.0
    %352 = vmatprep.subr.mxu0 0.0
    %353 = vmatpush1.msra.mxu0 0.0
    %354 = vmatprep.subr.mxu0 0.0
    %355 = vmatpush1.msra.mxu0 0.0
    %356 = vmatprep.subr.mxu0 0.0
    %357 = vmatpush1.msra.mxu0 0.0
    %358 = vmatprep.subr.mxu0 0.0
    %359 = vmatpush1.msra.mxu0 0.0
    %360 = vmatprep.subr.mxu0 0.0
    %361 = vmatpush1.msra.mxu0 0.0
    %362 = vmatprep.subr.mxu0 0.0
    %363 = vmatpush1.msra.mxu0 0.0
    %364 = vmatprep.subr.mxu0 0.0
    %365 = vmatpush1.msra.mxu0 0.0
    %366 = vmatprep.subr.mxu0 0.0
    %367 = vmatpush1.msra.mxu0 0.0
    %368 = vmatprep.subr.mxu0 0.0
    %369 = vmatpush1.msra.mxu0 0.0
    %370 = vmatprep.mubr.f32.mxu0 0.0
    %371 = vmatmul.mubr.f32.gmra.mrb[0].mxu0 %v288
    %v372 = vpop.f32.mrb[0].mxu0
    %v373 = vadd.f32 0.0, %v372
    %v374 = vpop.f32.mrb[0].mxu0
    %375 = vdwg.mxu0
    %v376 = vmax.f32 %v373, 0.0
    %s377 = scalar_lea.vmem [#allocation2], 512
    %v378 = vld [vmem:[%s377] sm:$0xff]
    %v379 = vld [vmem:[%s377 + $0x8] sm:$0xff]
    %v380 = vld [vmem:[%s377 + $0x10] sm:$0xff]
    %v381 = vld [vmem:[%s377 + $0x18] sm:$0xff]
    %v382 = vld [vmem:[%s377 + $0x20] sm:$0xff]
    %v383 = vld [vmem:[%s377 + $0x28] sm:$0xff]
    %v384 = vld [vmem:[%s377 + $0x30] sm:$0xff]
    %v385 = vld [vmem:[%s377 + $0x38] sm:$0xff]
    %v386 = vld [vmem:[%s377 + $0x40] sm:$0xff]
    %v387 = vld [vmem:[%s377 + $0x48] sm:$0xff]
    %v388 = vld [vmem:[%s377 + $0x50] sm:$0xff]
    %v389 = vld [vmem:[%s377 + $0x58] sm:$0xff]
    %v390 = vld [vmem:[%s377 + $0x60] sm:$0xff]
    %v391 = vld [vmem:[%s377 + $0x68] sm:$0xff]
    %v392 = vld [vmem:[%s377 + $0x70] sm:$0xff]
    %v393 = vld [vmem:[%s377 + $0x78] sm:$0xff]
    %394 = vmatprep.subr.mxu0 0.0
    %395 = vmatpush1.msra.mxu0 %v378
    %396 = vmatprep.subr.mxu0 0.0
    %397 = vmatpush1.msra.mxu0 %v379
    %398 = vmatprep.subr.mxu0 0.0
    %399 = vmatpush1.msra.mxu0 %v380
    %400 = vmatprep.subr.mxu0 0.0
    %401 = vmatpush1.msra.mxu0 %v381
    %402 = vmatprep.subr.mxu0 0.0
    %403 = vmatpush1.msra.mxu0 %v382
    %404 = vmatprep.subr.mxu0 0.0
    %405 = vmatpush1.msra.mxu0 %v383
    %406 = vmatprep.subr.mxu0 0.0
    %407 = vmatpush1.msra.mxu0 %v384
    %408 = vmatprep.subr.mxu0 0.0
    %409 = vmatpush1.msra.mxu0 %v385
    %410 = vmatprep.subr.mxu0 0.0
    %411 = vmatpush1.msra.mxu0 %v386
    %412 = vmatprep.subr.mxu0 0.0
    %413 = vmatpush1.msra.mxu0 %v387
    %414 = vmatprep.subr.mxu0 0.0
    %415 = vmatpush1.msra.mxu0 %v388
    %416 = vmatprep.subr.mxu0 0.0
    %417 = vmatpush1.msra.mxu0 %v389
    %418 = vmatprep.subr.mxu0 0.0
    %419 = vmatpush1.msra.mxu0 %v390
    %420 = vmatprep.subr.mxu0 0.0
    %421 = vmatpush1.msra.mxu0 %v391
    %422 = vmatprep.subr.mxu0 0.0
    %423 = vmatpush1.msra.mxu0 %v392
    %424 = vmatprep.subr.mxu0 0.0
    %425 = vmatpush1.msra.mxu0 %v393
    %426 = vmatprep.subr.mxu0 0.0
    %427 = vmatpush1.msra.mxu0 0.0
    %428 = vmatprep.subr.mxu0 0.0
    %429 = vmatpush1.msra.mxu0 0.0
    %430 = vmatprep.subr.mxu0 0.0
    %431 = vmatpush1.msra.mxu0 0.0
    %432 = vmatprep.subr.mxu0 0.0
    %433 = vmatpush1.msra.mxu0 0.0
    %434 = vmatprep.subr.mxu0 0.0
    %435 = vmatpush1.msra.mxu0 0.0
    %436 = vmatprep.subr.mxu0 0.0
    %437 = vmatpush1.msra.mxu0 0.0
    %438 = vmatprep.subr.mxu0 0.0
    %439 = vmatpush1.msra.mxu0 0.0
    %440 = vmatprep.subr.mxu0 0.0
    %441 = vmatpush1.msra.mxu0 0.0
    %442 = vmatprep.subr.mxu0 0.0
    %443 = vmatpush1.msra.mxu0 0.0
    %444 = vmatprep.subr.mxu0 0.0
    %445 = vmatpush1.msra.mxu0 0.0
    %446 = vmatprep.subr.mxu0 0.0
    %447 = vmatpush1.msra.mxu0 0.0
    %448 = vmatprep.subr.mxu0 0.0
    %449 = vmatpush1.msra.mxu0 0.0
    %450 = vmatprep.subr.mxu0 0.0
    %451 = vmatpush1.msra.mxu0 0.0
    %452 = vmatprep.subr.mxu0 0.0
    %453 = vmatpush1.msra.mxu0 0.0
    %454 = vmatprep.subr.mxu0 0.0
    %455 = vmatpush1.msra.mxu0 0.0
    %456 = vmatprep.subr.mxu0 0.0
    %457 = vmatpush1.msra.mxu0 0.0
    %458 = vmatprep.mubr.f32.mxu0 0.0
    %459 = vmatmul.mubr.f32.gmra.mrb[0].mxu0 %v376
    %v460 = vpop.f32.mrb[0].mxu0
    %v461 = vadd.f32 0.0, %v460
    %v462 = vpop.f32.mrb[0].mxu0
    %463 = vdwg.mxu0
    %v464 = vlaneseq
    %v465 = vand.u32 %v464, 127
    %vm466 = vcmp.ge.s32.totalorder %v465, 4
    %vm467 = vcmp.lt.s32.totalorder %v465, 8
    %vm468 = vmand %vm466, %vm467
    %v469 = vsel %vm468, %v461, 0.0
    %470 = vadd.xlane.f32.xlu0 %v469
    %v471 = vpop.xlane.xlu0 %470
    %v472 = vrot.slane %v471, 4
    %v473 = vadd.f32 %v471, %v472
    %v474 = vrot.slane %v473, 2
    %v475 = vadd.f32 %v473, %v474
    %v476 = vrot.slane %v475, 1
    %v477 = vadd.f32 %v475, %v476
    %s478 = vtos %v477
    %s479 = smul.f32 %s478, 0.03125
    %v480 = vstv %s479
    %v481 = vsub.f32 %v461, %v480
    %482 = vst [vmem:[%s2] sm:$0xff] %v481
    // Predicated region
    $region14: #{hiv_dueling_forward.1} parent=1 // pred_check
      _
    $region15: #{hiv_dueling_forward.1} parent=1 // pred_check_branch
      %484 = sbr.rel (0) target = $region17
    $region16: #{hiv_dueling_forward.1} parent=1 // pred_region
      _
    $region17: #{hiv_dueling_forward.1} parent=1 // pred_fallthru
      _
    // Predicated region
    $region18: #{hiv_dueling_forward.1} parent=1 // pred_check
      _
    $region19: #{hiv_dueling_forward.1} parent=1 // pred_check_branch
      %486 = sbr.rel (0) target = $region21
    $region20: #{hiv_dueling_forward.1} parent=1 // pred_region
      _
    $region21: #{hiv_dueling_forward.1} parent=1 // pred_fallthru
      _
    %487 = vsyncpa [#allocation3], 1

</llo_original>
